<compile_context>
chip_gen: v5e
topology: v5e:2x2
jax: 0.10.0
libtpu: 0.0.40
codegen_flags: <defaults>
</compile_context>

<pallas_src>
import functools

import jax
import jax.numpy as jnp
from jax.experimental import pallas as pl
from jax.experimental.pallas import tpu as pltpu

LANE = 128
VMEM_LIMIT_BYTES = 32 * 1024 * 1024


def _round_up(n, m):
    return ((n + m - 1) // m) * m


def _num_tensorcores():
    """Best-effort count of TensorCores per device (v7x = 2, else 1)."""
    try:
        dev = jax.devices()[0]
        n = getattr(dev, "num_cores", None)
        if isinstance(n, int) and n > 0:
            return n
        kind = str(getattr(dev, "device_kind", "")).lower()
        if "v7" in kind:
            return 2
    except Exception:
        pass
    return 1


def _choose_tb(batch, num_cores):
    """Rows per grid step. Must be a multiple of 16 or equal to the full batch."""
    if batch <= 16:
        return batch
    if num_cores >= 2:
        # Megacore (v7x): force >= 2 "parallel" grid steps so both TCs get work.
        tb = min(_round_up(pl.cdiv(batch, 2), 16), 256)
    else:
        # Single TC (v5e/v6e): big tiles amortize the ~0.35 us per-step overhead.
        tb = min(_round_up(batch, 16), 512)
    return tb if tb <= batch else batch


def _check_vmem_fit(tb, in_size, n1, n2, n3, limit=VMEM_LIMIT_BYTES):
    weights = 2 * (in_size * n1 + n1 * n2 + n2 * n3)     # bf16
    bias = 4 * (n1 + n2 + n3)                            # f32
    x_tile = 2 * 4 * tb * in_size                        # f32, double-buffered
    out_tile = 2 * 2 * tb * n3                           # bf16, double-buffered
    live = 6 * tb * (n1 + n2)                            # f32 + bf16 intermediates
    # Worst case: weights double-buffered (if Buffered(1) is unsupported).
    need = 2 * weights + 2 * bias + x_tile + out_tile + live
    assert need < 0.75 * limit, (
        "Weights + activation tiles exceed the scoped VMEM budget "
        f"({need} B vs limit {limit} B).")
    # TODO(synk): add an inner pipeline over n1/n2 (pltpu.emit_pipeline) when
    #             hidden sizes grow past the resident-weight VMEM budget.


# ----------------------------- kernel ---------------------------------------
def mlp_kernel(x_ref, w1_ref, w2_ref, w3_ref, b_ref, o_ref, *, n1, n2, n3):
    x = x_ref[...].astype(jnp.bfloat16)               # in-kernel f32 -> bf16 cast

    # packed biases: [b1 | b2' | b3'] at 128-aligned offsets, f32
    b1 = b_ref[:, 0:n1]
    b2 = b_ref[:, n1:n1 + n2]
    b3 = b_ref[:, n1 + n2:n1 + n2 + n3]

    # fc1 + ReLU     (BN1 + Dropout(eval) folded into fc2)
    h1 = jnp.dot(x, w1_ref[...], preferred_element_type=jnp.float32) + b1
    h1 = jnp.maximum(h1, 0.0).astype(jnp.bfloat16)

    # fc2(+BN1 folded) + ReLU     (BN2 folded into fc3)
    h2 = jnp.dot(h1, w2_ref[...], preferred_element_type=jnp.float32) + b2
    h2 = jnp.maximum(h2, 0.0).astype(jnp.bfloat16)

    # fc3(+BN2 folded) -> bf16 writeback (lane-dense, halved HBM traffic)
    o = jnp.dot(h2, w3_ref[...], preferred_element_type=jnp.float32) + b3
    o_ref[...] = o.astype(jnp.bfloat16)


# ----------------------------- wrapper ---------------------------------------
def model2_forward(x, folded, out_size):
    w1, w2, w3, bias = folded
    B, in_size = x.shape
    n1, n2, n3 = w1.shape[1], w2.shape[1], w3.shape[1]

    num_cores = _num_tensorcores()
    TB = _choose_tb(B, num_cores)
    grid = (pl.cdiv(B, TB),)

    _check_vmem_fit(TB, in_size, n1, n2, n3)

    flops = 2 * B * (in_size * n1 + n1 * n2 + n2 * n3)
    bytes_accessed = (4 * B * in_size
                      + 2 * (in_size * n1 + n1 * n2 + n2 * n3)
                      + 4 * (n1 + n2 + n3)
                      + 2 * B * n3)
    cost = pl.CostEstimate(flops=flops, transcendentals=0,
                           bytes_accessed=bytes_accessed)

    kernel = functools.partial(mlp_kernel, n1=n1, n2=n2, n3=n3)

    def run(single_buffer_weights):
        # Grid-invariant operands (index_map constant) only need one buffer.
        wkw = dict(pipeline_mode=pl.Buffered(1)) if single_buffer_weights else {}
        in_specs = [
            pl.BlockSpec((TB, in_size), lambda i: (i, 0)),            # x tile (f32)
            pl.BlockSpec((in_size, n1), lambda i: (0, 0), **wkw),     # w1 (bf16)
            pl.BlockSpec((n1, n2), lambda i: (0, 0), **wkw),          # w2 (BN1 folded)
            pl.BlockSpec((n2, n3), lambda i: (0, 0), **wkw),          # w3 (BN2 folded)
            pl.BlockSpec((1, n1 + n2 + n3), lambda i: (0, 0), **wkw), # packed biases
        ]
        return pl.pallas_call(
            kernel,
            out_shape=jax.ShapeDtypeStruct((B, n3), jnp.bfloat16),
            grid=grid,
            in_specs=in_specs,
            out_specs=pl.BlockSpec((TB, n3), lambda i: (i, 0)),
            compiler_params=pltpu.CompilerParams(
                dimension_semantics=("parallel",),
                vmem_limit_bytes=VMEM_LIMIT_BYTES),
            cost_estimate=cost,
        )(x, w1, w2, w3, bias)

    try:
        out = run(True)
    except Exception:
        # Fallback if this jax version rejects Buffered(1) on top-level specs.
        out = run(False)

    return out[:B, :out_size]


# ------------------------- parameter preparation ------------------------------
def init_params(key, input_size, hidden_size, output_size):
    """PyTorch-like raw parameters (weights stored (in,out); BN with running stats)."""
    hid2 = hidden_size // 2
    ks = jax.random.split(key, 14)

    def linear(kw, kb, fan_in, fan_out):
        bound = 1.0 / jnp.sqrt(float(fan_in))
        w = jax.random.uniform(kw, (fan_in, fan_out), jnp.float32, -bound, bound)
        b = jax.random.uniform(kb, (fan_out,), jnp.float32, -bound, bound)
        return w, b

    def bn(kg, kb, km, kv, n):
        gamma = jax.random.uniform(kg, (n,), jnp.float32, 0.8, 1.2)
        beta = 0.1 * jax.random.normal(kb, (n,), jnp.float32)
        rmean = 0.1 * jax.random.normal(km, (n,), jnp.float32)
        rvar = jax.random.uniform(kv, (n,), jnp.float32, 0.5, 1.5)
        return gamma, beta, rmean, rvar

    w1, b1 = linear(ks[0], ks[1], input_size, hidden_size)
    g1, be1, m1, v1 = bn(ks[2], ks[3], ks[4], ks[5], hidden_size)
    w2, b2 = linear(ks[6], ks[7], hidden_size, hid2)
    g2, be2, m2, v2 = bn(ks[8], ks[9], ks[10], ks[11], hid2)
    w3, b3 = linear(ks[12], ks[13], hid2, output_size)
    return (w1, b1, g1, be1, m1, v1, w2, b2, g2, be2, m2, v2, w3, b3)


def fold_and_pack(raw, eps=1e-5):
    """Fold BN (running stats) into the next linear layer, pad feature dims to
    lane multiples, cast weights to bf16 and pack the three biases into one block."""
    (w1, b1, g1, be1, m1, v1, w2, b2, g2, be2, m2, v2, w3, b3) = raw

    # BN (inference) as per-feature affine: y = h*s + t
    s1 = g1 / jnp.sqrt(v1 + eps)
    t1 = be1 - m1 * s1
    s2 = g2 / jnp.sqrt(v2 + eps)
    t2 = be2 - m2 * s2

    # Fold into the next linear (valid because Dropout is identity in eval).
    w2f = s1[:, None] * w2
    b2f = t1 @ w2 + b2
    w3f = s2[:, None] * w3
    b3f = t2 @ w3 + b3

    in_size, hid = w1.shape
    hid2 = w2.shape[1]
    out = w3.shape[1]
    n1 = _round_up(hid, LANE)
    n2 = _round_up(hid2, LANE)
    n3 = _round_up(out, LANE)

    def pad_w(w, rows, cols):
        return jnp.pad(w, ((0, rows - w.shape[0]), (0, cols - w.shape[1])))

    def pad_b(b, cols):
        return jnp.pad(b, (0, cols - b.shape[0]))

    w1p = pad_w(w1, in_size, n1).astype(jnp.bfloat16)
    w2p = pad_w(w2f, n1, n2).astype(jnp.bfloat16)
    w3p = pad_w(w3f, n2, n3).astype(jnp.bfloat16)
    biasp = jnp.concatenate(
        [pad_b(b1, n1), pad_b(b2f, n2), pad_b(b3f, n3)])[None, :].astype(jnp.float32)

    return (w1p, w2p, w3p, biasp), out


# ------------------------------ references ------------------------------------
def reference_like_kernel(x, folded, out_size):
    """Exact mirror of the kernel math (bf16 operands, f32 acc, bf16 store)."""
    w1, w2, w3, bias = folded
    n1, n2 = w1.shape[1], w2.shape[1]
    b1, b2, b3 = bias[:, :n1], bias[:, n1:n1 + n2], bias[:, n1 + n2:]
    h = jnp.dot(x.astype(jnp.bfloat16), w1, preferred_element_type=jnp.float32) + b1
    h = jnp.maximum(h, 0.0).astype(jnp.bfloat16)
    h = jnp.dot(h, w2, preferred_element_type=jnp.float32) + b2
    h = jnp.maximum(h, 0.0).astype(jnp.bfloat16)
    o = (jnp.dot(h, w3, preferred_element_type=jnp.float32) + b3).astype(jnp.bfloat16)
    return o[:, :out_size]


def reference_eval(x, raw, eps=1e-5):
    """Full-precision eval-mode forward of the original PyTorch module."""
    (w1, b1, g1, be1, m1, v1, w2, b2, g2, be2, m2, v2, w3, b3) = raw
    h = jnp.maximum(x @ w1 + b1, 0.0)
    h = (h - m1) / jnp.sqrt(v1 + eps) * g1 + be1
    h = jnp.maximum(h @ w2 + b2, 0.0)          # Dropout(eval) == identity
    h = (h - m2) / jnp.sqrt(v2 + eps) * g2 + be2
    return h @ w3 + b3


# --------------------------------- main ---------------------------------------
if __name__ == "__main__":
    batch, input_size, hidden_size, output_size = 8, 32, 64, 16

    key = jax.random.PRNGKey(0)
    kx, kp = jax.random.split(key)
    x = jax.random.normal(kx, (batch, input_size), jnp.float32)

    raw_params = init_params(kp, input_size, hidden_size, output_size)
    folded_params, out_size = fold_and_pack(raw_params)

    out = jax.block_until_ready(model2_forward(x, folded_params, out_size))
    assert out.shape == (batch, output_size)
    out_f32 = out.astype(jnp.float32)

    # (1) tight check against an exact mirror of the kernel numerics (bf16/f32)
    ref_mirror = reference_like_kernel(x, folded_params, out_size).astype(jnp.float32)
    assert jnp.allclose(out_f32, ref_mirror, atol=3e-2, rtol=3e-2)

    # (2) loose check against the full-f32 eval-mode module (bf16 quantization)
    ref_f32 = reference_eval(x, raw_params)
    assert jnp.allclose(out_f32, ref_f32, atol=1.5e-1, rtol=1.5e-1)

    print("KERNEL_OK")
</pallas_src>

<mosaic_0001>
module attributes {stable_mosaic.version = 11 : i64} {
  func.func @mlp_kernel(%arg0: i32, %arg1: memref<8x32xf32, #tpu.memory_space<vmem>>, %arg2: memref<32x128xbf16, #tpu.memory_space<vmem>>, %arg3: memref<128x128xbf16, #tpu.memory_space<vmem>>, %arg4: memref<128x128xbf16, #tpu.memory_space<vmem>>, %arg5: memref<1x384xf32, #tpu.memory_space<vmem>>, %arg6: memref<8x128xbf16, #tpu.memory_space<vmem>>) attributes {dimension_semantics = [#tpu.dimension_semantics<parallel>], iteration_bounds = array<i64: 1>, scalar_prefetch = 0 : i64, scratch_operands = 0 : i64, tpu.core_type = #tpu.core_type<tc>, window_params = [{transform_indices = @transform_0, window_bounds = array<i64: 8, 32>}, {pipeline_mode = #tpu.pipeline_mode<synchronous>, transform_indices = @transform_1, window_bounds = array<i64: 32, 128>}, {pipeline_mode = #tpu.pipeline_mode<synchronous>, transform_indices = @transform_2, window_bounds = array<i64: 128, 128>}, {pipeline_mode = #tpu.pipeline_mode<synchronous>, transform_indices = @transform_3, window_bounds = array<i64: 128, 128>}, {pipeline_mode = #tpu.pipeline_mode<synchronous>, transform_indices = @transform_4, window_bounds = array<i64: 1, 384>}, {transform_indices = @transform_5, window_bounds = array<i64: 8, 128>}]} {
    %c0 = arith.constant 0 : index
    %c0_0 = arith.constant 0 : index
    %0 = vector.load %arg1[%c0, %c0_0] : memref<8x32xf32, #tpu.memory_space<vmem>>, vector<8x32xf32>
    %1 = arith.truncf %0 : vector<8x32xf32> to vector<8x32xbf16>
    %c0_1 = arith.constant 0 : index
    %c0_2 = arith.constant 0 : index
    %2 = vector.load %arg5[%c0_1, %c0_2] : memref<1x384xf32, #tpu.memory_space<vmem>>, vector<1x128xf32>
    %c0_3 = arith.constant 0 : index
    %c128 = arith.constant 128 : index
    %3 = vector.load %arg5[%c0_3, %c128] : memref<1x384xf32, #tpu.memory_space<vmem>>, vector<1x128xf32>
    %c0_4 = arith.constant 0 : index
    %c256 = arith.constant 256 : index
    %4 = vector.load %arg5[%c0_4, %c256] : memref<1x384xf32, #tpu.memory_space<vmem>>, vector<1x128xf32>
    %c0_5 = arith.constant 0 : index
    %c0_6 = arith.constant 0 : index
    %5 = vector.load %arg2[%c0_5, %c0_6] : memref<32x128xbf16, #tpu.memory_space<vmem>>, vector<32x128xbf16>
    %cst = arith.constant dense<0.000000e+00> : vector<8x128xf32>
    %6 = tpu.matmul %1, %5, %cst {dimension_numbers = #tpu.dot_dimension_numbers<[1], [0], [0], [1], [0, 0, 1, 1], [], []>} : vector<8x32xbf16>, vector<32x128xbf16>, vector<8x128xf32> -> vector<8x128xf32>
    %7 = vector.broadcast %2 : vector<1x128xf32> to vector<8x128xf32>
    %8 = arith.addf %6, %7 : vector<8x128xf32>
    %cst_7 = arith.constant 0.000000e+00 : f32
    %9 = vector.broadcast %cst_7 : f32 to vector<8x128xf32>
    %10 = arith.maximumf %8, %9 : vector<8x128xf32>
    %11 = arith.truncf %10 : vector<8x128xf32> to vector<8x128xbf16>
    %c0_8 = arith.constant 0 : index
    %c0_9 = arith.constant 0 : index
    %12 = vector.load %arg3[%c0_8, %c0_9] : memref<128x128xbf16, #tpu.memory_space<vmem>>, vector<128x128xbf16>
    %cst_10 = arith.constant dense<0.000000e+00> : vector<8x128xf32>
    %13 = tpu.matmul %11, %12, %cst_10 {dimension_numbers = #tpu.dot_dimension_numbers<[1], [0], [0], [1], [0, 0, 1, 1], [], []>} : vector<8x128xbf16>, vector<128x128xbf16>, vector<8x128xf32> -> vector<8x128xf32>
    %14 = vector.broadcast %3 : vector<1x128xf32> to vector<8x128xf32>
    %15 = arith.addf %13, %14 : vector<8x128xf32>
    %cst_11 = arith.constant 0.000000e+00 : f32
    %16 = vector.broadcast %cst_11 : f32 to vector<8x128xf32>
    %17 = arith.maximumf %15, %16 : vector<8x128xf32>
    %18 = arith.truncf %17 : vector<8x128xf32> to vector<8x128xbf16>
    %c0_12 = arith.constant 0 : index
    %c0_13 = arith.constant 0 : index
    %19 = vector.load %arg4[%c0_12, %c0_13] : memref<128x128xbf16, #tpu.memory_space<vmem>>, vector<128x128xbf16>
    %cst_14 = arith.constant dense<0.000000e+00> : vector<8x128xf32>
    %20 = tpu.matmul %18, %19, %cst_14 {dimension_numbers = #tpu.dot_dimension_numbers<[1], [0], [0], [1], [0, 0, 1, 1], [], []>} : vector<8x128xbf16>, vector<128x128xbf16>, vector<8x128xf32> -> vector<8x128xf32>
    %21 = vector.broadcast %4 : vector<1x128xf32> to vector<8x128xf32>
    %22 = arith.addf %20, %21 : vector<8x128xf32>
    %23 = arith.truncf %22 : vector<8x128xf32> to vector<8x128xbf16>
    %c0_15 = arith.constant 0 : index
    %c0_16 = arith.constant 0 : index
    %24 = vector.load %arg6[%c0_15, %c0_16] : memref<8x128xbf16, #tpu.memory_space<vmem>>, vector<8x128xbf16>
    tpu.vector_store %arg6[%c0_15, %c0_16], %23 {strides = array<i32>} : memref<8x128xbf16, #tpu.memory_space<vmem>>, vector<8x128xbf16>,
    return
  }
  func.func @transform_0(%arg0: i32) -> (i32, i32) {
    %c0_i32 = arith.constant 0 : i32
    %c0_i32_0 = arith.constant 0 : i32
    return %arg0, %c0_i32 : i32, i32
  }
  func.func @transform_1(%arg0: i32) -> (i32, i32) {
    %c0_i32 = arith.constant 0 : i32
    %c0_i32_0 = arith.constant 0 : i32
    %c0_i32_1 = arith.constant 0 : i32
    return %c0_i32, %c0_i32_0 : i32, i32
  }
  func.func @transform_2(%arg0: i32) -> (i32, i32) {
    %c0_i32 = arith.constant 0 : i32
    %c0_i32_0 = arith.constant 0 : i32
    %c0_i32_1 = arith.constant 0 : i32
    return %c0_i32, %c0_i32_0 : i32, i32
  }
  func.func @transform_3(%arg0: i32) -> (i32, i32) {
    %c0_i32 = arith.constant 0 : i32
    %c0_i32_0 = arith.constant 0 : i32
    %c0_i32_1 = arith.constant 0 : i32
    return %c0_i32, %c0_i32_0 : i32, i32
  }
  func.func @transform_4(%arg0: i32) -> (i32, i32) {
    %c0_i32 = arith.constant 0 : i32
    %c0_i32_0 = arith.constant 0 : i32
    %c0_i32_1 = arith.constant 0 : i32
    return %c0_i32, %c0_i32_0 : i32, i32
  }
  func.func @transform_5(%arg0: i32) -> (i32, i32) {
    %c0_i32 = arith.constant 0 : i32
    %c0_i32_0 = arith.constant 0 : i32
    return %arg0, %c0_i32 : i32, i32
  }
}

module attributes {stable_mosaic.version = 11 : i64} {
  func.func @mlp_kernel(%arg0: i32, %arg1: memref<8x32xf32, #tpu.memory_space<vmem>>, %arg2: memref<32x128xbf16, #tpu.memory_space<vmem>>, %arg3: memref<128x128xbf16, #tpu.memory_space<vmem>>, %arg4: memref<128x128xbf16, #tpu.memory_space<vmem>>, %arg5: memref<1x384xf32, #tpu.memory_space<vmem>>, %arg6: memref<8x128xbf16, #tpu.memory_space<vmem>>) attributes {dimension_semantics = [#tpu.dimension_semantics<parallel>], iteration_bounds = array<i64: 1>, scalar_prefetch = 0 : i64, scratch_operands = 0 : i64, tpu.core_type = #tpu.core_type<tc>, window_params = [{transform_indices = @transform_0, window_bounds = array<i64: 8, 32>}, {pipeline_mode = #tpu.pipeline_mode<synchronous>, transform_indices = @transform_1, window_bounds = array<i64: 32, 128>}, {pipeline_mode = #tpu.pipeline_mode<synchronous>, transform_indices = @transform_2, window_bounds = array<i64: 128, 128>}, {pipeline_mode = #tpu.pipeline_mode<synchronous>, transform_indices = @transform_3, window_bounds = array<i64: 128, 128>}, {pipeline_mode = #tpu.pipeline_mode<synchronous>, transform_indices = @transform_4, window_bounds = array<i64: 1, 384>}, {transform_indices = @transform_5, window_bounds = array<i64: 8, 128>}]} {
    %c0 = arith.constant 0 : index
    %c0_0 = arith.constant 0 : index
    %0 = vector.load %arg1[%c0, %c0_0] : memref<8x32xf32, #tpu.memory_space<vmem>>, vector<8x32xf32>
    %1 = arith.truncf %0 : vector<8x32xf32> to vector<8x32xbf16>
    %c0_1 = arith.constant 0 : index
    %c0_2 = arith.constant 0 : index
    %2 = vector.load %arg5[%c0_1, %c0_2] : memref<1x384xf32, #tpu.memory_space<vmem>>, vector<1x128xf32>
    %c0_3 = arith.constant 0 : index
    %c128 = arith.constant 128 : index
    %3 = vector.load %arg5[%c0_3, %c128] : memref<1x384xf32, #tpu.memory_space<vmem>>, vector<1x128xf32>
    %c0_4 = arith.constant 0 : index
    %c256 = arith.constant 256 : index
    %4 = vector.load %arg5[%c0_4, %c256] : memref<1x384xf32, #tpu.memory_space<vmem>>, vector<1x128xf32>
    %c0_5 = arith.constant 0 : index
    %c0_6 = arith.constant 0 : index
    %5 = vector.load %arg2[%c0_5, %c0_6] : memref<32x128xbf16, #tpu.memory_space<vmem>>, vector<32x128xbf16>
    %cst = arith.constant dense<0.000000e+00> : vector<8x128xf32>
    %6 = tpu.matmul %1, %5, %cst {dimension_numbers = #tpu.dot_dimension_numbers<[1], [0], [0], [1], [0, 0, 1, 1], [], []>} : vector<8x32xbf16>, vector<32x128xbf16>, vector<8x128xf32> -> vector<8x128xf32>
    %7 = vector.broadcast %2 : vector<1x128xf32> to vector<8x128xf32>
    %8 = arith.addf %6, %7 : vector<8x128xf32>
    %cst_7 = arith.constant 0.000000e+00 : f32
    %9 = vector.broadcast %cst_7 : f32 to vector<8x128xf32>
    %10 = arith.maximumf %8, %9 : vector<8x128xf32>
    %11 = arith.truncf %10 : vector<8x128xf32> to vector<8x128xbf16>
    %c0_8 = arith.constant 0 : index
    %c0_9 = arith.constant 0 : index
    %12 = vector.load %arg3[%c0_8, %c0_9] : memref<128x128xbf16, #tpu.memory_space<vmem>>, vector<128x128xbf16>
    %cst_10 = arith.constant dense<0.000000e+00> : vector<8x128xf32>
    %13 = tpu.matmul %11, %12, %cst_10 {dimension_numbers = #tpu.dot_dimension_numbers<[1], [0], [0], [1], [0, 0, 1, 1], [], []>} : vector<8x128xbf16>, vector<128x128xbf16>, vector<8x128xf32> -> vector<8x128xf32>
    %14 = vector.broadcast %3 : vector<1x128xf32> to vector<8x128xf32>
    %15 = arith.addf %13, %14 : vector<8x128xf32>
    %cst_11 = arith.constant 0.000000e+00 : f32
    %16 = vector.broadcast %cst_11 : f32 to vector<8x128xf32>
    %17 = arith.maximumf %15, %16 : vector<8x128xf32>
    %18 = arith.truncf %17 : vector<8x128xf32> to vector<8x128xbf16>
    %c0_12 = arith.constant 0 : index
    %c0_13 = arith.constant 0 : index
    %19 = vector.load %arg4[%c0_12, %c0_13] : memref<128x128xbf16, #tpu.memory_space<vmem>>, vector<128x128xbf16>
    %cst_14 = arith.constant dense<0.000000e+00> : vector<8x128xf32>
    %20 = tpu.matmul %18, %19, %cst_14 {dimension_numbers = #tpu.dot_dimension_numbers<[1], [0], [0], [1], [0, 0, 1, 1], [], []>} : vector<8x128xbf16>, vector<128x128xbf16>, vector<8x128xf32> -> vector<8x128xf32>
    %21 = vector.broadcast %4 : vector<1x128xf32> to vector<8x128xf32>
    %22 = arith.addf %20, %21 : vector<8x128xf32>
    %23 = arith.truncf %22 : vector<8x128xf32> to vector<8x128xbf16>
    %c0_15 = arith.constant 0 : index
    %c0_16 = arith.constant 0 : index
    %24 = vector.load %arg6[%c0_15, %c0_16] : memref<8x128xbf16, #tpu.memory_space<vmem>>, vector<8x128xbf16>
    tpu.vector_store %arg6[%c0_15, %c0_16], %23 {strides = array<i32>} : memref<8x128xbf16, #tpu.memory_space<vmem>>, vector<8x128xbf16>,
    return
  }
  func.func @transform_0(%arg0: i32) -> (i32, i32) {
    %c0_i32 = arith.constant 0 : i32
    %c0_i32_0 = arith.constant 0 : i32
    return %arg0, %c0_i32 : i32, i32
  }
  func.func @transform_1(%arg0: i32) -> (i32, i32) {
    %c0_i32 = arith.constant 0 : i32
    %c0_i32_0 = arith.constant 0 : i32
    %c0_i32_1 = arith.constant 0 : i32
    return %c0_i32, %c0_i32_0 : i32, i32
  }
  func.func @transform_2(%arg0: i32) -> (i32, i32) {
    %c0_i32 = arith.constant 0 : i32
    %c0_i32_0 = arith.constant 0 : i32
    %c0_i32_1 = arith.constant 0 : i32
    return %c0_i32, %c0_i32_0 : i32, i32
  }
  func.func @transform_3(%arg0: i32) -> (i32, i32) {
    %c0_i32 = arith.constant 0 : i32
    %c0_i32_0 = arith.constant 0 : i32
    %c0_i32_1 = arith.constant 0 : i32
    return %c0_i32, %c0_i32_0 : i32, i32
  }
  func.func @transform_4(%arg0: i32) -> (i32, i32) {
    %c0_i32 = arith.constant 0 : i32
    %c0_i32_0 = arith.constant 0 : i32
    %c0_i32_1 = arith.constant 0 : i32
    return %c0_i32, %c0_i32_0 : i32, i32
  }
  func.func @transform_5(%arg0: i32) -> (i32, i32) {
    %c0_i32 = arith.constant 0 : i32
    %c0_i32_0 = arith.constant 0 : i32
    return %arg0, %c0_i32 : i32, i32
  }
}

</mosaic_0001>

<llo_original>
// kernel: tpu_custom_call.1
$region0: #{tpu_custom_call.1}
  #allocation0 [shape = 'u32[]', space=smem, size = 0x4, offset = 0x4, fixed_abs, tag = 'smem constant byte address 0x4 - core index']
  #allocation1 [shape = 'u32[72,128]{1,0:T(1,128)}', space=vmem, size = 0x9000, scoped, tag = 'internal scratch']
  %s0 = inlined_call_operand.hbm [shape: f32[8,32], index: 0, kind: input, shape index: {}]
  %s1 = inlined_call_operand.hbm [shape: bf16[32,128], index: 1, kind: input, shape index: {}]
  %s2 = inlined_call_operand.hbm [shape: bf16[128,128], index: 2, kind: input, shape index: {}]
  %s3 = inlined_call_operand.hbm [shape: bf16[128,128], index: 3, kind: input, shape index: {}]
  %s4 = inlined_call_operand.vmem [shape: f32[1,384], index: 4, kind: input, shape index: {}]
  %s5 = inlined_call_operand.hbm [shape: bf16[8,128], index: 5, kind: output, shape index: {}]
  %s6 = sld [smem:[#allocation0]]
  $region46: #{tpu_custom_call.1} parent=0
    _
  %s8 = ssub.s32 1, %s6
  %s9 = scalar_select 0, %s8, %s6
  $region1: #{tpu_custom_call.1} parent=0
    #allocation2 [shape = 'u8[4096]{0}', space=vmem, size = 0x1000, scoped, tag = 'input window, operand 0, single buffered']
    #allocation3 [shape = 's32[1]{0}', space=sflag, size = 0x4, scoped, tag = 'scoped memory for tpu_custom_call.1']
    #allocation4 [shape = 's32[1]{0}', space=sflag, size = 0x4, scoped, tag = 'scoped memory for tpu_custom_call.1']
    #allocation5 [shape = 'u8[8192]{0}', space=vmem, size = 0x2000, scoped, tag = 'input window, operand 1, single buffered']
    #allocation6 [shape = 's32[1]{0}', space=sflag, size = 0x4, scoped, tag = 'scoped memory for tpu_custom_call.1']
    #allocation7 [shape = 'u8[32768]{0}', space=vmem, size = 0x8000, scoped, tag = 'input window, operand 2, single buffered']
    #allocation8 [shape = 'u8[32768]{0}', space=vmem, size = 0x8000, scoped, tag = 'input window, operand 3, single buffered']
    #allocation9 [shape = 's32[1]{0}', space=sflag, size = 0x4, scoped, tag = 'scoped memory for tpu_custom_call.1']
    #allocation10 [shape = 'u8[2048]{0}', space=vmem, size = 0x800, scoped, tag = 'output window, operand 0, single buffered']
    %10 = vsyncpa [#allocation3], 0
    %11 = vsyncpa [#allocation6], 0
    %12 = vsyncpa [#allocation9], 0
    %13 = vsyncpa [#allocation4], 0
    // Predicated region
    $region2: #{tpu_custom_call.1} parent=1 // pred_check
      _
    $region3: #{tpu_custom_call.1} parent=1 // pred_check_branch
      %15 = sbr.rel (0) target = $region5
    $region4: #{tpu_custom_call.1} parent=1 // pred_region
      %17 = vsyncadd [#allocation3], 0
      %s19 = sshll.u32 %s0, 4
      %s20 = int_to_ptr.hbm [resolvable:$true] %s19
      %s21 = sshll.u32 [#allocation2], 4
      %s22 = int_to_ptr.vmem [resolvable:$true] %s21
      %24 = dma.hbm_to_vmem [thread:$0]  %s20, 128, %s22, [#allocation3]
    $region5: #{tpu_custom_call.1} parent=1 // pred_fallthru
      _
    // Predicated region
    $region6: #{tpu_custom_call.1} parent=1 // pred_check
      _
    $region7: #{tpu_custom_call.1} parent=1 // pred_check_branch
      %26 = sbr.rel (0) target = $region9
    $region8: #{tpu_custom_call.1} parent=1 // pred_region
      %28 = vsyncadd [#allocation6], 0
      %s29 = sshll.u32 %s1, 4
      %s30 = int_to_ptr.hbm [resolvable:$true] %s29
      %s31 = sshll.u32 [#allocation5], 4
      %s32 = int_to_ptr.vmem [resolvable:$true] %s31
      %37 = dma.hbm_to_vmem [thread:$0]  %s30, 256, %s32, [#allocation6], 64, 64, 4
    $region9: #{tpu_custom_call.1} parent=1 // pred_fallthru
      _
    // Predicated region
    $region10: #{tpu_custom_call.1} parent=1 // pred_check
      _
    $region11: #{tpu_custom_call.1} parent=1 // pred_check_branch
      %39 = sbr.rel (0) target = $region13
    $region12: #{tpu_custom_call.1} parent=1 // pred_region
      %41 = vsyncadd [#allocation6], 0
      %s42 = sshll.u32 %s2, 4
      %s43 = int_to_ptr.hbm [resolvable:$true] %s42
      %s44 = sshll.u32 [#allocation7], 4
      %s45 = int_to_ptr.vmem [resolvable:$true] %s44
      %50 = dma.hbm_to_vmem [thread:$0]  %s43, 1024, %s45, [#allocation6], 64, 64, 4
    $region13: #{tpu_custom_call.1} parent=1 // pred_fallthru
      _
    // Predicated region
    $region14: #{tpu_custom_call.1} parent=1 // pred_check
      _
    $region15: #{tpu_custom_call.1} parent=1 // pred_check_branch
      %52 = sbr.rel (0) target = $region17
    $region16: #{tpu_custom_call.1} parent=1 // pred_region
      %54 = vsyncadd [#allocation9], 0
      %s55 = sshll.u32 %s3, 4
      %s56 = int_to_ptr.hbm [resolvable:$true] %s55
      %s57 = sshll.u32 [#allocation8], 4
      %s58 = int_to_ptr.vmem [resolvable:$true] %s57
      %63 = dma.hbm_to_vmem [thread:$0]  %s56, 1024, %s58, [#allocation9], 64, 64, 4
    $region17: #{tpu_custom_call.1} parent=1 // pred_fallthru
      _
    // Predicated region
    $region18: #{tpu_custom_call.1} parent=1 // pred_check
      _
    $region19: #{tpu_custom_call.1} parent=1 // pred_check_branch
      %65 = sbr.rel (0) target = $region21
    $region20: #{tpu_custom_call.1} parent=1 // pred_region
      _
    $region21: #{tpu_custom_call.1} parent=1 // pred_fallthru
      _
    // Predicated region
    $region22: #{tpu_custom_call.1} parent=1 // pred_check
      _
    $region23: #{tpu_custom_call.1} parent=1 // pred_check_branch
      %67 = sbr.rel (0) target = $region25
    $region24: #{tpu_custom_call.1} parent=1 // pred_region
      %69 = dma.done [#allocation3], 128
    $region25: #{tpu_custom_call.1} parent=1 // pred_fallthru
      _
    // Predicated region
    $region26: #{tpu_custom_call.1} parent=1 // pred_check
      _
    $region27: #{tpu_custom_call.1} parent=1 // pred_check_branch
      %71 = sbr.rel (0) target = $region29
    $region28: #{tpu_custom_call.1} parent=1 // pred_region
      %73 = dma.done [#allocation6], 256
    $region29: #{tpu_custom_call.1} parent=1 // pred_fallthru
      _
    // Predicated region
    $region30: #{tpu_custom_call.1} parent=1 // pred_check
      _
    $region31: #{tpu_custom_call.1} parent=1 // pred_check_branch
      %75 = sbr.rel (0) target = $region33
    $region32: #{tpu_custom_call.1} parent=1 // pred_region
      %77 = dma.done [#allocation6], 1024
    $region33: #{tpu_custom_call.1} parent=1 // pred_fallthru
      _
    // Predicated region
    $region34: #{tpu_custom_call.1} parent=1 // pred_check
      _
    $region35: #{tpu_custom_call.1} parent=1 // pred_check_branch
      %79 = sbr.rel (0) target = $region37
    $region36: #{tpu_custom_call.1} parent=1 // pred_region
      %81 = dma.done [#allocation9], 1024
    $region37: #{tpu_custom_call.1} parent=1 // pred_fallthru
      _
    %v83 = vld [vmem:[#allocation2] sm:$0xff]
    %v84 = vpack.c.bf16 %v83, %v83
    %v85 = vld [vmem:[%s4] sm:$0x1]
    %v86 = vld [vmem:[%s4 + $0x1] sm:$0x1]
    %v87 = vld [vmem:[%s4 + $0x2] sm:$0x1]
    %v88 = vld [vmem:[#allocation5] sm:$0xf]
    %v89 = vld [vmem:[#allocation5 + $0x4] sm:$0xf]
    %v90 = vld [vmem:[#allocation5 + $0x8] sm:$0xf]
    %v91 = vld [vmem:[#allocation5 + $0xc] sm:$0xf]
    %v93 = vperm.slane %v85, 0
    %v99 = vunpack.c.l.b16 %v88
    %v100 = vunpack.c.l.b16 %v89
    %v101 = vunpack.c.l.b16 %v90
    %v102 = vunpack.c.l.b16 %v91
    %v103 = vpack.c.b16 %v100, %v99
    %v104 = vpack.c.b16 %v102, %v101
    %vm107 = vcmask 261120
    %v109 = vsel %vm107, %v84, 0
    %111 = vmatpush.bf16.msra.mxu0 0
    %112 = vmatpush.bf16.msra.mxu0 0
    %113 = vmatpush.bf16.msra.mxu0 0
    %114 = vmatpush.bf16.msra.mxu0 0
    %115 = vmatpush.bf16.msra.mxu0 0
    %116 = vmatpush.bf16.msra.mxu0 0
    %117 = vmatpush.bf16.msra.mxu0 %v104
    %118 = vmatpush.bf16.msra.mxu0 %v103
    %119 = vmatmul.bf16.gmra.mxu0 %v109
    %v120 = vpop.f32.mrf.mxu0
    %v121 = vadd.f32 %v93, %v120
    %v122 = vpop.f32.mrf.mxu0
    %123 = vdwg.mxu0
    %v124 = vmax.f32 %v121, 0.0
    %v125 = vpack.c.bf16 %v124, %v124
    %v126 = vld [vmem:[#allocation7] sm:$0xf]
    %v127 = vld [vmem:[#allocation7 + $0x4] sm:$0xf]
    %v128 = vld [vmem:[#allocation7 + $0x8] sm:$0xf]
    %v129 = vld [vmem:[#allocation7 + $0xc] sm:$0xf]
    %v130 = vld [vmem:[#allocation7 + $0x10] sm:$0xf]
    %v131 = vld [vmem:[#allocation7 + $0x14] sm:$0xf]
    %v132 = vld [vmem:[#allocation7 + $0x18] sm:$0xf]
    %v133 = vld [vmem:[#allocation7 + $0x1c] sm:$0xf]
    %v134 = vld [vmem:[#allocation7 + $0x20] sm:$0xf]
    %v135 = vld [vmem:[#allocation7 + $0x24] sm:$0xf]
    %v136 = vld [vmem:[#allocation7 + $0x28] sm:$0xf]
    %v137 = vld [vmem:[#allocation7 + $0x2c] sm:$0xf]
    %v138 = vld [vmem:[#allocation7 + $0x30] sm:$0xf]
    %v139 = vld [vmem:[#allocation7 + $0x34] sm:$0xf]
    %v140 = vld [vmem:[#allocation7 + $0x38] sm:$0xf]
    %v141 = vld [vmem:[#allocation7 + $0x3c] sm:$0xf]
    %v143 = vperm.slane %v86, 0
    %v161 = vunpack.c.l.b16 %v126
    %v162 = vunpack.c.l.b16 %v127
    %v163 = vunpack.c.l.b16 %v128
    %v164 = vunpack.c.l.b16 %v129
    %v165 = vunpack.c.l.b16 %v130
    %v166 = vunpack.c.l.b16 %v131
    %v167 = vunpack.c.l.b16 %v132
    %v168 = vunpack.c.l.b16 %v133
    %v169 = vunpack.c.l.b16 %v134
    %v170 = vunpack.c.l.b16 %v135
    %v171 = vunpack.c.l.b16 %v136
    %v172 = vunpack.c.l.b16 %v137
    %v173 = vunpack.c.l.b16 %v138
    %v174 = vunpack.c.l.b16 %v139
    %v175 = vunpack.c.l.b16 %v140
    %v176 = vunpack.c.l.b16 %v141
    %v177 = vpack.c.b16 %v162, %v161
    %v178 = vpack.c.b16 %v164, %v163
    %v179 = vpack.c.b16 %v166, %v165
    %v180 = vpack.c.b16 %v168, %v167
    %v181 = vpack.c.b16 %v170, %v169
    %v182 = vpack.c.b16 %v172, %v171
    %v183 = vpack.c.b16 %v174, %v173
    %v184 = vpack.c.b16 %v176, %v175
    %193 = vmatpush.bf16.msra.mxu0 %v184
    %194 = vmatpush.bf16.msra.mxu0 %v183
    %195 = vmatpush.bf16.msra.mxu0 %v182
    %196 = vmatpush.bf16.msra.mxu0 %v181
    %197 = vmatpush.bf16.msra.mxu0 %v180
    %198 = vmatpush.bf16.msra.mxu0 %v179
    %199 = vmatpush.bf16.msra.mxu0 %v178
    %200 = vmatpush.bf16.msra.mxu0 %v177
    %201 = vmatmul.bf16.gmra.mxu0 %v125
    %v202 = vpop.f32.mrf.mxu0
    %v203 = vadd.f32 %v143, %v202
    %v204 = vpop.f32.mrf.mxu0
    %205 = vdwg.mxu0
    %v206 = vmax.f32 %v203, 0.0
    %v207 = vpack.c.bf16 %v206, %v206
    %v208 = vld [vmem:[#allocation8] sm:$0xf]
    %v209 = vld [vmem:[#allocation8 + $0x4] sm:$0xf]
    %v210 = vld [vmem:[#allocation8 + $0x8] sm:$0xf]
    %v211 = vld [vmem:[#allocation8 + $0xc] sm:$0xf]
    %v212 = vld [vmem:[#allocation8 + $0x10] sm:$0xf]
    %v213 = vld [vmem:[#allocation8 + $0x14] sm:$0xf]
    %v214 = vld [vmem:[#allocation8 + $0x18] sm:$0xf]
    %v215 = vld [vmem:[#allocation8 + $0x1c] sm:$0xf]
    %v216 = vld [vmem:[#allocation8 + $0x20] sm:$0xf]
    %v217 = vld [vmem:[#allocation8 + $0x24] sm:$0xf]
    %v218 = vld [vmem:[#allocation8 + $0x28] sm:$0xf]
    %v219 = vld [vmem:[#allocation8 + $0x2c] sm:$0xf]
    %v220 = vld [vmem:[#allocation8 + $0x30] sm:$0xf]
    %v221 = vld [vmem:[#allocation8 + $0x34] sm:$0xf]
    %v222 = vld [vmem:[#allocation8 + $0x38] sm:$0xf]
    %v223 = vld [vmem:[#allocation8 + $0x3c] sm:$0xf]
    %v225 = vperm.slane %v87, 0
    %v243 = vunpack.c.l.b16 %v208
    %v244 = vunpack.c.l.b16 %v209
    %v245 = vunpack.c.l.b16 %v210
    %v246 = vunpack.c.l.b16 %v211
    %v247 = vunpack.c.l.b16 %v212
    %v248 = vunpack.c.l.b16 %v213
    %v249 = vunpack.c.l.b16 %v214
    %v250 = vunpack.c.l.b16 %v215
    %v251 = vunpack.c.l.b16 %v216
    %v252 = vunpack.c.l.b16 %v217
    %v253 = vunpack.c.l.b16 %v218
    %v254 = vunpack.c.l.b16 %v219
    %v255 = vunpack.c.l.b16 %v220
    %v256 = vunpack.c.l.b16 %v221
    %v257 = vunpack.c.l.b16 %v222
    %v258 = vunpack.c.l.b16 %v223
    %v259 = vpack.c.b16 %v244, %v243
    %v260 = vpack.c.b16 %v246, %v245
    %v261 = vpack.c.b16 %v248, %v247
    %v262 = vpack.c.b16 %v250, %v249
    %v263 = vpack.c.b16 %v252, %v251
    %v264 = vpack.c.b16 %v254, %v253
    %v265 = vpack.c.b16 %v256, %v255
    %v266 = vpack.c.b16 %v258, %v257
    %275 = vmatpush.bf16.msra.mxu0 %v266
    %276 = vmatpush.bf16.msra.mxu0 %v265
    %277 = vmatpush.bf16.msra.mxu0 %v264
    %278 = vmatpush.bf16.msra.mxu0 %v263
    %279 = vmatpush.bf16.msra.mxu0 %v262
    %280 = vmatpush.bf16.msra.mxu0 %v261
    %281 = vmatpush.bf16.msra.mxu0 %v260
    %282 = vmatpush.bf16.msra.mxu0 %v259
    %283 = vmatmul.bf16.gmra.mxu0 %v207
    %v284 = vpop.f32.mrf.mxu0
    %v285 = vadd.f32 %v225, %v284
    %v286 = vpop.f32.mrf.mxu0
    %287 = vdwg.mxu0
    %v288 = vpack.c.bf16 %v285, %v285
    %289 = vst [vmem:[#allocation10] sm:$0xf] %v288
    // Predicated region
    $region38: #{tpu_custom_call.1} parent=1 // pred_check
      _
    $region39: #{tpu_custom_call.1} parent=1 // pred_check_branch
      %291 = sbr.rel (0) target = $region41
    $region40: #{tpu_custom_call.1} parent=1 // pred_region
      %293 = vsyncadd [#allocation4], 0
      %s295 = sshll.u32 [#allocation10], 4
      %s296 = int_to_ptr.vmem [resolvable:$true] %s295
      %s297 = sshll.u32 %s5, 4
      %s298 = int_to_ptr.hbm [resolvable:$true] %s297
      %300 = dma.vmem_to_hbm [thread:$0]  %s296, 64, %s298, [#allocation4]
    $region41: #{tpu_custom_call.1} parent=1 // pred_fallthru
      _
    // Predicated region
    $region42: #{tpu_custom_call.1} parent=1 // pred_check
      _
    $region43: #{tpu_custom_call.1} parent=1 // pred_check_branch
      %302 = sbr.rel (0) target = $region45
    $region44: #{tpu_custom_call.1} parent=1 // pred_region
      %304 = dma.done [#allocation4], 64
    $region45: #{tpu_custom_call.1} parent=1 // pred_fallthru
      _
    %305 = vsyncpa [#allocation3], 1
    %306 = vsyncpa [#allocation6], 1
    %307 = vsyncpa [#allocation9], 1
    %308 = vsyncpa [#allocation4], 1

// kernel: tpu_custom_call.1
$region0: #{tpu_custom_call.1}
  #allocation0 [shape = 'u32[]', space=smem, size = 0x4, offset = 0x4, fixed_abs, tag = 'smem constant byte address 0x4 - core index']
  #allocation1 [shape = 'u32[72,128]{1,0:T(1,128)}', space=vmem, size = 0x9000, scoped, tag = 'internal scratch']
  %s0 = inlined_call_operand.hbm [shape: f32[8,32], index: 0, kind: input, shape index: {}]
  %s1 = inlined_call_operand.hbm [shape: bf16[32,128], index: 1, kind: input, shape index: {}]
  %s2 = inlined_call_operand.hbm [shape: bf16[128,128], index: 2, kind: input, shape index: {}]
  %s3 = inlined_call_operand.hbm [shape: bf16[128,128], index: 3, kind: input, shape index: {}]
  %s4 = inlined_call_operand.vmem [shape: f32[1,384], index: 4, kind: input, shape index: {}]
  %s5 = inlined_call_operand.hbm [shape: bf16[8,128], index: 5, kind: output, shape index: {}]
  %s6 = sld [smem:[#allocation0]]
  $region46: #{tpu_custom_call.1} parent=0
    _
  %s8 = ssub.s32 1, %s6
  %s9 = scalar_select 0, %s8, %s6
  $region1: #{tpu_custom_call.1} parent=0
    #allocation2 [shape = 'u8[4096]{0}', space=vmem, size = 0x1000, scoped, tag = 'input window, operand 0, single buffered']
    #allocation3 [shape = 's32[1]{0}', space=sflag, size = 0x4, scoped, tag = 'scoped memory for tpu_custom_call.1']
    #allocation4 [shape = 's32[1]{0}', space=sflag, size = 0x4, scoped, tag = 'scoped memory for tpu_custom_call.1']
    #allocation5 [shape = 'u8[8192]{0}', space=vmem, size = 0x2000, scoped, tag = 'input window, operand 1, single buffered']
    #allocation6 [shape = 's32[1]{0}', space=sflag, size = 0x4, scoped, tag = 'scoped memory for tpu_custom_call.1']
    #allocation7 [shape = 'u8[32768]{0}', space=vmem, size = 0x8000, scoped, tag = 'input window, operand 2, single buffered']
    #allocation8 [shape = 'u8[32768]{0}', space=vmem, size = 0x8000, scoped, tag = 'input window, operand 3, single buffered']
    #allocation9 [shape = 's32[1]{0}', space=sflag, size = 0x4, scoped, tag = 'scoped memory for tpu_custom_call.1']
    #allocation10 [shape = 'u8[2048]{0}', space=vmem, size = 0x800, scoped, tag = 'output window, operand 0, single buffered']
    %10 = vsyncpa [#allocation3], 0
    %11 = vsyncpa [#allocation6], 0
    %12 = vsyncpa [#allocation9], 0
    %13 = vsyncpa [#allocation4], 0
    // Predicated region
    $region2: #{tpu_custom_call.1} parent=1 // pred_check
      _
    $region3: #{tpu_custom_call.1} parent=1 // pred_check_branch
      %15 = sbr.rel (0) target = $region5
    $region4: #{tpu_custom_call.1} parent=1 // pred_region
      %17 = vsyncadd [#allocation3], 0
      %s19 = sshll.u32 %s0, 4
      %s20 = int_to_ptr.hbm [resolvable:$true] %s19
      %s21 = sshll.u32 [#allocation2], 4
      %s22 = int_to_ptr.vmem [resolvable:$true] %s21
      %24 = dma.hbm_to_vmem [thread:$0]  %s20, 128, %s22, [#allocation3]
    $region5: #{tpu_custom_call.1} parent=1 // pred_fallthru
      _
    // Predicated region
    $region6: #{tpu_custom_call.1} parent=1 // pred_check
      _
    $region7: #{tpu_custom_call.1} parent=1 // pred_check_branch
      %26 = sbr.rel (0) target = $region9
    $region8: #{tpu_custom_call.1} parent=1 // pred_region
      %28 = vsyncadd [#allocation6], 0
      %s29 = sshll.u32 %s1, 4
      %s30 = int_to_ptr.hbm [resolvable:$true] %s29
      %s31 = sshll.u32 [#allocation5], 4
      %s32 = int_to_ptr.vmem [resolvable:$true] %s31
      %37 = dma.hbm_to_vmem [thread:$0]  %s30, 256, %s32, [#allocation6], 64, 64, 4
    $region9: #{tpu_custom_call.1} parent=1 // pred_fallthru
      _
    // Predicated region
    $region10: #{tpu_custom_call.1} parent=1 // pred_check
      _
    $region11: #{tpu_custom_call.1} parent=1 // pred_check_branch
      %39 = sbr.rel (0) target = $region13
    $region12: #{tpu_custom_call.1} parent=1 // pred_region
      %41 = vsyncadd [#allocation6], 0
      %s42 = sshll.u32 %s2, 4
      %s43 = int_to_ptr.hbm [resolvable:$true] %s42
      %s44 = sshll.u32 [#allocation7], 4
      %s45 = int_to_ptr.vmem [resolvable:$true] %s44
      %50 = dma.hbm_to_vmem [thread:$0]  %s43, 1024, %s45, [#allocation6], 64, 64, 4
    $region13: #{tpu_custom_call.1} parent=1 // pred_fallthru
      _
    // Predicated region
    $region14: #{tpu_custom_call.1} parent=1 // pred_check
      _
    $region15: #{tpu_custom_call.1} parent=1 // pred_check_branch
      %52 = sbr.rel (0) target = $region17
    $region16: #{tpu_custom_call.1} parent=1 // pred_region
      %54 = vsyncadd [#allocation9], 0
      %s55 = sshll.u32 %s3, 4
      %s56 = int_to_ptr.hbm [resolvable:$true] %s55
      %s57 = sshll.u32 [#allocation8], 4
      %s58 = int_to_ptr.vmem [resolvable:$true] %s57
      %63 = dma.hbm_to_vmem [thread:$0]  %s56, 1024, %s58, [#allocation9], 64, 64, 4
    $region17: #{tpu_custom_call.1} parent=1 // pred_fallthru
      _
    // Predicated region
    $region18: #{tpu_custom_call.1} parent=1 // pred_check
      _
    $region19: #{tpu_custom_call.1} parent=1 // pred_check_branch
      %65 = sbr.rel (0) target = $region21
    $region20: #{tpu_custom_call.1} parent=1 // pred_region
      _
    $region21: #{tpu_custom_call.1} parent=1 // pred_fallthru
      _
    // Predicated region
    $region22: #{tpu_custom_call.1} parent=1 // pred_check
      _
    $region23: #{tpu_custom_call.1} parent=1 // pred_check_branch
      %67 = sbr.rel (0) target = $region25
    $region24: #{tpu_custom_call.1} parent=1 // pred_region
      %69 = dma.done [#allocation3], 128
    $region25: #{tpu_custom_call.1} parent=1 // pred_fallthru
      _
    // Predicated region
    $region26: #{tpu_custom_call.1} parent=1 // pred_check
      _
    $region27: #{tpu_custom_call.1} parent=1 // pred_check_branch
      %71 = sbr.rel (0) target = $region29
    $region28: #{tpu_custom_call.1} parent=1 // pred_region
      %73 = dma.done [#allocation6], 256
    $region29: #{tpu_custom_call.1} parent=1 // pred_fallthru
      _
    // Predicated region
    $region30: #{tpu_custom_call.1} parent=1 // pred_check
      _
    $region31: #{tpu_custom_call.1} parent=1 // pred_check_branch
      %75 = sbr.rel (0) target = $region33
    $region32: #{tpu_custom_call.1} parent=1 // pred_region
      %77 = dma.done [#allocation6], 1024
    $region33: #{tpu_custom_call.1} parent=1 // pred_fallthru
      _
    // Predicated region
    $region34: #{tpu_custom_call.1} parent=1 // pred_check
      _
    $region35: #{tpu_custom_call.1} parent=1 // pred_check_branch
      %79 = sbr.rel (0) target = $region37
    $region36: #{tpu_custom_call.1} parent=1 // pred_region
      %81 = dma.done [#allocation9], 1024
    $region37: #{tpu_custom_call.1} parent=1 // pred_fallthru
      _
    %v83 = vld [vmem:[#allocation2] sm:$0xff]
    %v84 = vpack.c.bf16 %v83, %v83
    %v85 = vld [vmem:[%s4] sm:$0x1]
    %v86 = vld [vmem:[%s4 + $0x1] sm:$0x1]
    %v87 = vld [vmem:[%s4 + $0x2] sm:$0x1]
    %v88 = vld [vmem:[#allocation5] sm:$0xf]
    %v89 = vld [vmem:[#allocation5 + $0x4] sm:$0xf]
    %v90 = vld [vmem:[#allocation5 + $0x8] sm:$0xf]
    %v91 = vld [vmem:[#allocation5 + $0xc] sm:$0xf]
    %v93 = vperm.slane %v85, 0
    %v99 = vunpack.c.l.b16 %v88
    %v100 = vunpack.c.l.b16 %v89
    %v101 = vunpack.c.l.b16 %v90
    %v102 = vunpack.c.l.b16 %v91
    %v103 = vpack.c.b16 %v100, %v99
    %v104 = vpack.c.b16 %v102, %v101
    %vm107 = vcmask 261120
    %v109 = vsel %vm107, %v84, 0
    %111 = vmatpush.bf16.msra.mxu0 0
    %112 = vmatpush.bf16.msra.mxu0 0
    %113 = vmatpush.bf16.msra.mxu0 0
    %114 = vmatpush.bf16.msra.mxu0 0
    %115 = vmatpush.bf16.msra.mxu0 0
    %116 = vmatpush.bf16.msra.mxu0 0
    %117 = vmatpush.bf16.msra.mxu0 %v104
    %118 = vmatpush.bf16.msra.mxu0 %v103
    %119 = vmatmul.bf16.gmra.mxu0 %v109
    %v120 = vpop.f32.mrf.mxu0
    %v121 = vadd.f32 %v93, %v120
    %v122 = vpop.f32.mrf.mxu0
    %123 = vdwg.mxu0
    %v124 = vmax.f32 %v121, 0.0
    %v125 = vpack.c.bf16 %v124, %v124
    %v126 = vld [vmem:[#allocation7] sm:$0xf]
    %v127 = vld [vmem:[#allocation7 + $0x4] sm:$0xf]
    %v128 = vld [vmem:[#allocation7 + $0x8] sm:$0xf]
    %v129 = vld [vmem:[#allocation7 + $0xc] sm:$0xf]
    %v130 = vld [vmem:[#allocation7 + $0x10] sm:$0xf]
    %v131 = vld [vmem:[#allocation7 + $0x14] sm:$0xf]
    %v132 = vld [vmem:[#allocation7 + $0x18] sm:$0xf]
    %v133 = vld [vmem:[#allocation7 + $0x1c] sm:$0xf]
    %v134 = vld [vmem:[#allocation7 + $0x20] sm:$0xf]
    %v135 = vld [vmem:[#allocation7 + $0x24] sm:$0xf]
    %v136 = vld [vmem:[#allocation7 + $0x28] sm:$0xf]
    %v137 = vld [vmem:[#allocation7 + $0x2c] sm:$0xf]
    %v138 = vld [vmem:[#allocation7 + $0x30] sm:$0xf]
    %v139 = vld [vmem:[#allocation7 + $0x34] sm:$0xf]
    %v140 = vld [vmem:[#allocation7 + $0x38] sm:$0xf]
    %v141 = vld [vmem:[#allocation7 + $0x3c] sm:$0xf]
    %v143 = vperm.slane %v86, 0
    %v161 = vunpack.c.l.b16 %v126
    %v162 = vunpack.c.l.b16 %v127
    %v163 = vunpack.c.l.b16 %v128
    %v164 = vunpack.c.l.b16 %v129
    %v165 = vunpack.c.l.b16 %v130
    %v166 = vunpack.c.l.b16 %v131
    %v167 = vunpack.c.l.b16 %v132
    %v168 = vunpack.c.l.b16 %v133
    %v169 = vunpack.c.l.b16 %v134
    %v170 = vunpack.c.l.b16 %v135
    %v171 = vunpack.c.l.b16 %v136
    %v172 = vunpack.c.l.b16 %v137
    %v173 = vunpack.c.l.b16 %v138
    %v174 = vunpack.c.l.b16 %v139
    %v175 = vunpack.c.l.b16 %v140
    %v176 = vunpack.c.l.b16 %v141
    %v177 = vpack.c.b16 %v162, %v161
    %v178 = vpack.c.b16 %v164, %v163
    %v179 = vpack.c.b16 %v166, %v165
    %v180 = vpack.c.b16 %v168, %v167
    %v181 = vpack.c.b16 %v170, %v169
    %v182 = vpack.c.b16 %v172, %v171
    %v183 = vpack.c.b16 %v174, %v173
    %v184 = vpack.c.b16 %v176, %v175
    %193 = vmatpush.bf16.msra.mxu0 %v184
    %194 = vmatpush.bf16.msra.mxu0 %v183
    %195 = vmatpush.bf16.msra.mxu0 %v182
    %196 = vmatpush.bf16.msra.mxu0 %v181
    %197 = vmatpush.bf16.msra.mxu0 %v180
    %198 = vmatpush.bf16.msra.mxu0 %v179
    %199 = vmatpush.bf16.msra.mxu0 %v178
    %200 = vmatpush.bf16.msra.mxu0 %v177
    %201 = vmatmul.bf16.gmra.mxu0 %v125
    %v202 = vpop.f32.mrf.mxu0
    %v203 = vadd.f32 %v143, %v202
    %v204 = vpop.f32.mrf.mxu0
    %205 = vdwg.mxu0
    %v206 = vmax.f32 %v203, 0.0
    %v207 = vpack.c.bf16 %v206, %v206
    %v208 = vld [vmem:[#allocation8] sm:$0xf]
    %v209 = vld [vmem:[#allocation8 + $0x4] sm:$0xf]
    %v210 = vld [vmem:[#allocation8 + $0x8] sm:$0xf]
    %v211 = vld [vmem:[#allocation8 + $0xc] sm:$0xf]
    %v212 = vld [vmem:[#allocation8 + $0x10] sm:$0xf]
    %v213 = vld [vmem:[#allocation8 + $0x14] sm:$0xf]
    %v214 = vld [vmem:[#allocation8 + $0x18] sm:$0xf]
    %v215 = vld [vmem:[#allocation8 + $0x1c] sm:$0xf]
    %v216 = vld [vmem:[#allocation8 + $0x20] sm:$0xf]
    %v217 = vld [vmem:[#allocation8 + $0x24] sm:$0xf]
    %v218 = vld [vmem:[#allocation8 + $0x28] sm:$0xf]
    %v219 = vld [vmem:[#allocation8 + $0x2c] sm:$0xf]
    %v220 = vld [vmem:[#allocation8 + $0x30] sm:$0xf]
    %v221 = vld [vmem:[#allocation8 + $0x34] sm:$0xf]
    %v222 = vld [vmem:[#allocation8 + $0x38] sm:$0xf]
    %v223 = vld [vmem:[#allocation8 + $0x3c] sm:$0xf]
    %v225 = vperm.slane %v87, 0
    %v243 = vunpack.c.l.b16 %v208
    %v244 = vunpack.c.l.b16 %v209
    %v245 = vunpack.c.l.b16 %v210
    %v246 = vunpack.c.l.b16 %v211
    %v247 = vunpack.c.l.b16 %v212
    %v248 = vunpack.c.l.b16 %v213
    %v249 = vunpack.c.l.b16 %v214
    %v250 = vunpack.c.l.b16 %v215
    %v251 = vunpack.c.l.b16 %v216
    %v252 = vunpack.c.l.b16 %v217
    %v253 = vunpack.c.l.b16 %v218
    %v254 = vunpack.c.l.b16 %v219
    %v255 = vunpack.c.l.b16 %v220
    %v256 = vunpack.c.l.b16 %v221
    %v257 = vunpack.c.l.b16 %v222
    %v258 = vunpack.c.l.b16 %v223
    %v259 = vpack.c.b16 %v244, %v243
    %v260 = vpack.c.b16 %v246, %v245
    %v261 = vpack.c.b16 %v248, %v247
    %v262 = vpack.c.b16 %v250, %v249
    %v263 = vpack.c.b16 %v252, %v251
    %v264 = vpack.c.b16 %v254, %v253
    %v265 = vpack.c.b16 %v256, %v255
    %v266 = vpack.c.b16 %v258, %v257
    %275 = vmatpush.bf16.msra.mxu0 %v266
    %276 = vmatpush.bf16.msra.mxu0 %v265
    %277 = vmatpush.bf16.msra.mxu0 %v264
    %278 = vmatpush.bf16.msra.mxu0 %v263
    %279 = vmatpush.bf16.msra.mxu0 %v262
    %280 = vmatpush.bf16.msra.mxu0 %v261
    %281 = vmatpush.bf16.msra.mxu0 %v260
    %282 = vmatpush.bf16.msra.mxu0 %v259
    %283 = vmatmul.bf16.gmra.mxu0 %v207
    %v284 = vpop.f32.mrf.mxu0
    %v285 = vadd.f32 %v225, %v284
    %v286 = vpop.f32.mrf.mxu0
    %287 = vdwg.mxu0
    %v288 = vpack.c.bf16 %v285, %v285
    %289 = vst [vmem:[#allocation10] sm:$0xf] %v288
    // Predicated region
    $region38: #{tpu_custom_call.1} parent=1 // pred_check
      _
    $region39: #{tpu_custom_call.1} parent=1 // pred_check_branch
      %291 = sbr.rel (0) target = $region41
    $region40: #{tpu_custom_call.1} parent=1 // pred_region
      %293 = vsyncadd [#allocation4], 0
      %s295 = sshll.u32 [#allocation10], 4
      %s296 = int_to_ptr.vmem [resolvable:$true] %s295
      %s297 = sshll.u32 %s5, 4
      %s298 = int_to_ptr.hbm [resolvable:$true] %s297
      %300 = dma.vmem_to_hbm [thread:$0]  %s296, 64, %s298, [#allocation4]
    $region41: #{tpu_custom_call.1} parent=1 // pred_fallthru
      _
    // Predicated region
    $region42: #{tpu_custom_call.1} parent=1 // pred_check
      _
    $region43: #{tpu_custom_call.1} parent=1 // pred_check_branch
      %302 = sbr.rel (0) target = $region45
    $region44: #{tpu_custom_call.1} parent=1 // pred_region
      %304 = dma.done [#allocation4], 64
    $region45: #{tpu_custom_call.1} parent=1 // pred_fallthru
      _
    %305 = vsyncpa [#allocation3], 1
    %306 = vsyncpa [#allocation6], 1
    %307 = vsyncpa [#allocation9], 1
    %308 = vsyncpa [#allocation4], 1

</llo_original>
